<compile_context>
chip_gen: v7x
topology: tpu7x:2x2x1
jax: 0.10.0
libtpu: 0.0.40
codegen_flags: <defaults>
</compile_context>

<pallas_src>
import jax
import jax.numpy as jnp
from jax import lax
from jax.experimental import pallas as pl
from jax.experimental.pallas import tpu as pltpu

K = 5          # conv kernel size
PAD = 2        # 'same' padding
LANE = 128     # TPU lane width
TARGET_GW = 512  # lanes per grid step to aim for (~85% of HBM roofline measured)


def _cdiv(a, b):
    return -(-a // b)


def _choose_tiling(N, L):
    """Pick (batch elements per step G, grid size NG, lane width GW)."""
    # Aim for ~TARGET_GW lanes per step to amortize the ~0.35us/step overhead and
    # fill the 256-wide MXU N dim on v6e/v7x.
    G = max(1, min(N, TARGET_GW // max(L, 1)))
    NG = _cdiv(N, G)
    # Prefer >= 2 grid steps so the "parallel" axis can shard across v7x's 2 TCs.
    if NG < 2 and N > 1:
        G = _cdiv(N, 2)
        NG = _cdiv(N, G)
    GW = _cdiv(G * L, LANE) * LANE
    return G, NG, GW


def _vmem_limit_bytes(C, GW, single_buf_weights):
    """Generation-aware scoped-VMEM request derived from the actual tile sizes."""
    wb = 1 if single_buf_weights else 2
    weights = wb * 2 * (C * K * C + C) * 4            # two convs' weights + biases
    acts = 2 * 2 * (C * GW) * 4                       # x / out tiles, double-buffered
    scratch = 8 * (C * GW) * 4                        # in-kernel intermediates headroom
    need = weights + acts + scratch
    limit = int(min(96 * 2**20, max(32 * 2**20, 2 * need)))
    try:  # cap by physical VMEM of the actual chip (64 MiB on v7x, 128 MiB v5e/v6e)
        cap = int(pltpu.get_tpu_info().vmem_capacity_bytes * 3 // 4)
        limit = min(limit, max(cap, 16 * 2**20))
    except Exception:
        pass
    return limit


def _make_kernel(L, C, per_tap, use_bf16):
    mm_dtype = jnp.bfloat16 if use_bf16 else jnp.float32

    def kernel(x_ref, w1_ref, b1_ref, w2_ref, b2_ref, o_ref):
        # x_ref : (1, C, GW)  channel-major slab; G batch elements side-by-side on lanes
        # w*_ref: (C, K*C)    tap-fused weights; contraction row order is k*C + ci
        # b*_ref: (C, 1)
        # o_ref : (1, C, GW)
        GW = x_ref.shape[2]
        x = x_ref[0]                                              # (C, GW) f32

        # lane position inside each length-L element; pad lanes (>= G*L) compute
        # garbage that is sliced off on the host and never read by valid lanes.
        pos = lax.broadcasted_iota(jnp.int32, (1, GW), 1) % L
        valid = [(pos + (k - PAD) >= 0) & (pos + (k - PAD) < L) for k in range(K)]

        def tap(a, k):
            # Left-shift by (k - PAD) lanes via an XLU roll (free slot here); the
            # wrap-around values only land in positions valid[k] masks off, and the
            # mask also implements Conv1d's zero 'same' padding at element edges.
            d = k - PAD
            s = a if d == 0 else pltpu.roll(a, shift=(-d) % GW, axis=1)
            return jnp.where(valid[k], s, 0.0)

        if per_tap:
            # Large-C path: 5 per-tap (C,C)x(C,GW) dots, f32 accumulator. Contraction
            # stays = C >= 128 so the MXU is fed, without materializing the (K*C, GW)
            # im2col slab (VMEM traffic / spill pressure).
            def conv(a, w_ref, b_ref):
                w = w_ref[...]
                acc = jnp.zeros((C, GW), jnp.float32)
                for k in range(K):
                    wk = w[:, k * C:(k + 1) * C].astype(mm_dtype)
                    acc = acc + jnp.dot(wk, tap(a, k).astype(mm_dtype),
                                        preferred_element_type=jnp.float32)
                return jnp.maximum(acc + b_ref[...], 0.0)
        else:
            # Tiny-C path: fuse the K taps into ONE matmul (contraction = K*C) which
            # keeps the MXU pipeline fuller; the slab is tiny so VMEM is a non-issue.
            def conv(a, w_ref, b_ref):
                cols = jnp.concatenate([tap(a, k) for k in range(K)], axis=0)
                acc = jnp.dot(w_ref[...].astype(mm_dtype), cols.astype(mm_dtype),
                              preferred_element_type=jnp.float32)
                return jnp.maximum(acc + b_ref[...], 0.0)

        h = conv(x, w1_ref, b1_ref)       # conv1 -> ReLU (stays in registers)
        y = conv(h, w2_ref, b2_ref)       # conv2 -> ReLU
        o_ref[0] = (x + y).astype(o_ref.dtype)   # residual add

    return kernel


def residual_block(x, w1, b1, w2, b2):
    """x: (N, C, L);  w*: (C, C, K) [Cout, Cin, K];  b*: (C,).  Returns (N, C, L)."""
    N, C, L = x.shape
    G, NG, GW = _choose_tiling(N, L)
    Np = NG * G

    f32 = jnp.float32
    # Layout plumbing (host side): channel-major, batch folded into lanes ->
    # lane-dense, unmasked vst/vld inside the kernel.
    xt = jnp.transpose(x, (1, 0, 2)).astype(f32)                  # (C, N, L)
    if Np != N:
        xt = jnp.pad(xt, ((0, 0), (0, Np - N), (0, 0)))
    xg = xt.reshape(C, NG, G * L)
    if GW != G * L:
        xg = jnp.pad(xg, ((0, 0), (0, 0), (0, GW - G * L)))
    xg = jnp.transpose(xg, (1, 0, 2))                             # (NG, C, GW)

    # Fuse the K taps into the matmul contraction dim: (Cout, K*Cin), row k*C+ci.
    w1_cat = jnp.transpose(w1, (0, 2, 1)).reshape(C, K * C).astype(f32)
    w2_cat = jnp.transpose(w2, (0, 2, 1)).reshape(C, K * C).astype(f32)
    b1_c = b1.reshape(C, 1).astype(f32)
    b2_c = b2.reshape(C, 1).astype(f32)

    per_tap = C >= 128            # large-C: per-tap dots instead of im2col slab
    use_bf16 = C >= 256           # compute-bound regime only (~1e-2 tolerance)
    single_buf_w = C >= 128       # grid-invariant weights: no need to double-buffer

    if single_buf_w:
        w_spec = pl.BlockSpec((C, K * C), lambda g: (0, 0),
                              pipeline_mode=pl.Buffered(1))
        b_spec = pl.BlockSpec((C, 1), lambda g: (0, 0),
                              pipeline_mode=pl.Buffered(1))
    else:
        w_spec = pl.BlockSpec((C, K * C), lambda g: (0, 0))
        b_spec = pl.BlockSpec((C, 1), lambda g: (0, 0))

    out = pl.pallas_call(
        _make_kernel(L, C, per_tap, use_bf16),
        out_shape=jax.ShapeDtypeStruct((NG, C, GW), x.dtype),
        grid_spec=pltpu.PrefetchScalarGridSpec(
            num_scalar_prefetch=0,
            grid=(NG,),
            in_specs=[
                pl.BlockSpec((1, C, GW), lambda g: (g, 0, 0)),
                w_spec, b_spec, w_spec, b_spec,
            ],
            out_specs=pl.BlockSpec((1, C, GW), lambda g: (g, 0, 0)),
        ),
        compiler_params=pltpu.CompilerParams(
            dimension_semantics=("parallel",),
            vmem_limit_bytes=_vmem_limit_bytes(C, GW, single_buf_w)),
    )(xg, w1_cat, b1_c, w2_cat, b2_c)

    # Undo the layout plumbing: (NG, C, GW) -> (N, C, L).
    y = jnp.transpose(out, (1, 0, 2))[:, :, :G * L].reshape(C, Np, L)
    return jnp.transpose(y[:, :N, :], (1, 0, 2)).astype(x.dtype)


def _reference(x, w1, b1, w2, b2):
    """Plain-JAX reference matching PyTorch Conv1d semantics."""
    def conv1d(inp, w, b):
        out = lax.conv_general_dilated(
            inp, w, window_strides=(1,), padding=[(PAD, PAD)],
            dimension_numbers=("NCH", "OIH", "NCH"))
        return out + b[None, :, None]
    h = jnp.maximum(conv1d(x, w1, b1), 0.0)
    y = jnp.maximum(conv1d(h, w2, b2), 0.0)
    return x + y


if __name__ == "__main__":
    # small shapes: batch=2, hidden_size (channels)=8, sequence length=16
    N, C, L = 2, 8, 16
    key = jax.random.PRNGKey(0)
    kx, kw1, kb1, kw2, kb2 = jax.random.split(key, 5)

    x = jax.random.normal(kx, (N, C, L), dtype=jnp.float32)
    w1 = jax.random.normal(kw1, (C, C, K), dtype=jnp.float32) * 0.1
    b1 = jax.random.normal(kb1, (C,), dtype=jnp.float32) * 0.1
    w2 = jax.random.normal(kw2, (C, C, K), dtype=jnp.float32) * 0.1
    b2 = jax.random.normal(kb2, (C,), dtype=jnp.float32) * 0.1

    out = jax.block_until_ready(residual_block(x, w1, b1, w2, b2))
    ref = jax.block_until_ready(_reference(x, w1, b1, w2, b2))

    assert out.shape == (N, C, L)
    assert jnp.allclose(out, ref, atol=1e-4, rtol=1e-4), "mismatch vs reference"

    print("KERNEL_OK")
</pallas_src>

<mosaic_0001>
module attributes {stable_mosaic.version = 11 : i64} {
  func.func @kernel(%arg0: i32, %arg1: memref<1x8x128xf32, #tpu.memory_space<vmem>>, %arg2: memref<8x40xf32, #tpu.memory_space<vmem>>, %arg3: memref<8x1xf32, #tpu.memory_space<vmem>>, %arg4: memref<8x40xf32, #tpu.memory_space<vmem>>, %arg5: memref<8x1xf32, #tpu.memory_space<vmem>>, %arg6: memref<1x8x128xf32, #tpu.memory_space<vmem>>) attributes {dimension_semantics = [#tpu.dimension_semantics<parallel>], iteration_bounds = array<i64: 2>, scalar_prefetch = 0 : i64, scratch_operands = 0 : i64, tpu.core_type = #tpu.core_type<tc>, window_params = [{transform_indices = @transform_0, window_bounds = array<i64: 1, 8, 128>}, {pipeline_mode = #tpu.pipeline_mode<synchronous>, transform_indices = @transform_1, window_bounds = array<i64: 8, 40>}, {pipeline_mode = #tpu.pipeline_mode<synchronous>, transform_indices = @transform_2, window_bounds = array<i64: 8, 1>}, {pipeline_mode = #tpu.pipeline_mode<synchronous>, transform_indices = @transform_3, window_bounds = array<i64: 8, 40>}, {pipeline_mode = #tpu.pipeline_mode<synchronous>, transform_indices = @transform_4, window_bounds = array<i64: 8, 1>}, {transform_indices = @transform_5, window_bounds = array<i64: 1, 8, 128>}]} {
    %c0 = arith.constant 0 : index
    %c0_0 = arith.constant 0 : index
    %c0_1 = arith.constant 0 : index
    %0 = vector.load %arg1[%c0, %c0_0, %c0_1] : memref<1x8x128xf32, #tpu.memory_space<vmem>>, vector<1x8x128xf32>
    %1 = vector.shape_cast %0 : vector<1x8x128xf32> to vector<8x128xf32>
    %2 = tpu.iota {dimensions = array<i32: 1>} : vector<1x128xi32>
    %c16_i32 = arith.constant 16 : i32
    %c0_i32 = arith.constant 0 : i32
    %3 = arith.cmpi eq, %c16_i32, %c0_i32 : i32
    %c1_i32 = arith.constant 1 : i32
    %4 = arith.select %3, %c1_i32, %c16_i32 : i32
    %5 = vector.broadcast %4 : i32 to vector<1x128xi32>
    %6 = arith.remsi %2, %5 : vector<1x128xi32>
    %c0_i32_2 = arith.constant 0 : i32
    %7 = vector.broadcast %c0_i32_2 : i32 to vector<1x128xi32>
    %8 = arith.cmpi ne, %6, %7 : vector<1x128xi32>
    %c0_i32_3 = arith.constant 0 : i32
    %9 = vector.broadcast %c0_i32_3 : i32 to vector<1x128xi32>
    %10 = arith.cmpi slt, %6, %9 : vector<1x128xi32>
    %c0_i32_4 = arith.constant 0 : i32
    %11 = arith.cmpi slt, %4, %c0_i32_4 : i32
    %12 = vector.broadcast %11 : i1 to vector<1x128xi1>
    %13 = vector.broadcast %12 : vector<1x128xi1> to vector<1x128xi1>
    %14 = arith.xori %10, %13 : vector<1x128xi1>
    %15 = arith.andi %14, %8 : vector<1x128xi1>
    %16 = vector.broadcast %4 : i32 to vector<1x128xi32>
    %17 = arith.addi %6, %16 : vector<1x128xi32>
    %18 = arith.select %15, %17, %6 : vector<1x128xi1>, vector<1x128xi32>
    %c-2_i32 = arith.constant -2 : i32
    %19 = vector.broadcast %c-2_i32 : i32 to vector<1x128xi32>
    %20 = arith.addi %18, %19 : vector<1x128xi32>
    %c0_i32_5 = arith.constant 0 : i32
    %21 = vector.broadcast %c0_i32_5 : i32 to vector<1x128xi32>
    %22 = arith.cmpi sge, %20, %21 : vector<1x128xi32>
    %c-2_i32_6 = arith.constant -2 : i32
    %23 = vector.broadcast %c-2_i32_6 : i32 to vector<1x128xi32>
    %24 = arith.addi %18, %23 : vector<1x128xi32>
    %c16_i32_7 = arith.constant 16 : i32
    %25 = vector.broadcast %c16_i32_7 : i32 to vector<1x128xi32>
    %26 = arith.cmpi slt, %24, %25 : vector<1x128xi32>
    %27 = arith.andi %22, %26 : vector<1x128xi1>
    %c-1_i32 = arith.constant -1 : i32
    %28 = vector.broadcast %c-1_i32 : i32 to vector<1x128xi32>
    %29 = arith.addi %18, %28 : vector<1x128xi32>
    %c0_i32_8 = arith.constant 0 : i32
    %30 = vector.broadcast %c0_i32_8 : i32 to vector<1x128xi32>
    %31 = arith.cmpi sge, %29, %30 : vector<1x128xi32>
    %c-1_i32_9 = arith.constant -1 : i32
    %32 = vector.broadcast %c-1_i32_9 : i32 to vector<1x128xi32>
    %33 = arith.addi %18, %32 : vector<1x128xi32>
    %c16_i32_10 = arith.constant 16 : i32
    %34 = vector.broadcast %c16_i32_10 : i32 to vector<1x128xi32>
    %35 = arith.cmpi slt, %33, %34 : vector<1x128xi32>
    %36 = arith.andi %31, %35 : vector<1x128xi1>
    %c0_i32_11 = arith.constant 0 : i32
    %37 = vector.broadcast %c0_i32_11 : i32 to vector<1x128xi32>
    %38 = arith.addi %18, %37 : vector<1x128xi32>
    %c0_i32_12 = arith.constant 0 : i32
    %39 = vector.broadcast %c0_i32_12 : i32 to vector<1x128xi32>
    %40 = arith.cmpi sge, %38, %39 : vector<1x128xi32>
    %c0_i32_13 = arith.constant 0 : i32
    %41 = vector.broadcast %c0_i32_13 : i32 to vector<1x128xi32>
    %42 = arith.addi %18, %41 : vector<1x128xi32>
    %c16_i32_14 = arith.constant 16 : i32
    %43 = vector.broadcast %c16_i32_14 : i32 to vector<1x128xi32>
    %44 = arith.cmpi slt, %42, %43 : vector<1x128xi32>
    %45 = arith.andi %40, %44 : vector<1x128xi1>
    %c1_i32_15 = arith.constant 1 : i32
    %46 = vector.broadcast %c1_i32_15 : i32 to vector<1x128xi32>
    %47 = arith.addi %18, %46 : vector<1x128xi32>
    %c0_i32_16 = arith.constant 0 : i32
    %48 = vector.broadcast %c0_i32_16 : i32 to vector<1x128xi32>
    %49 = arith.cmpi sge, %47, %48 : vector<1x128xi32>
    %c1_i32_17 = arith.constant 1 : i32
    %50 = vector.broadcast %c1_i32_17 : i32 to vector<1x128xi32>
    %51 = arith.addi %18, %50 : vector<1x128xi32>
    %c16_i32_18 = arith.constant 16 : i32
    %52 = vector.broadcast %c16_i32_18 : i32 to vector<1x128xi32>
    %53 = arith.cmpi slt, %51, %52 : vector<1x128xi32>
    %54 = arith.andi %49, %53 : vector<1x128xi1>
    %c2_i32 = arith.constant 2 : i32
    %55 = vector.broadcast %c2_i32 : i32 to vector<1x128xi32>
    %56 = arith.addi %18, %55 : vector<1x128xi32>
    %c0_i32_19 = arith.constant 0 : i32
    %57 = vector.broadcast %c0_i32_19 : i32 to vector<1x128xi32>
    %58 = arith.cmpi sge, %56, %57 : vector<1x128xi32>
    %c2_i32_20 = arith.constant 2 : i32
    %59 = vector.broadcast %c2_i32_20 : i32 to vector<1x128xi32>
    %60 = arith.addi %18, %59 : vector<1x128xi32>
    %c16_i32_21 = arith.constant 16 : i32
    %61 = vector.broadcast %c16_i32_21 : i32 to vector<1x128xi32>
    %62 = arith.cmpi slt, %60, %61 : vector<1x128xi32>
    %63 = arith.andi %58, %62 : vector<1x128xi1>
    %c2_i32_22 = arith.constant 2 : i32
    %64 = tpu.dynamic_rotate %1 by %c2_i32_22 dim 1 : vector<8x128xf32>, i32 -> vector<8x128xf32>
    %cst = arith.constant 0.000000e+00 : f32
    %65 = vector.shape_cast %27 : vector<1x128xi1> to vector<1x128xi1>
    %66 = vector.broadcast %65 : vector<1x128xi1> to vector<8x128xi1>
    %67 = vector.broadcast %cst : f32 to vector<8x128xf32>
    %68 = arith.select %66, %64, %67 : vector<8x128xi1>, vector<8x128xf32>
    %c1_i32_23 = arith.constant 1 : i32
    %69 = tpu.dynamic_rotate %1 by %c1_i32_23 dim 1 : vector<8x128xf32>, i32 -> vector<8x128xf32>
    %cst_24 = arith.constant 0.000000e+00 : f32
    %70 = vector.shape_cast %36 : vector<1x128xi1> to vector<1x128xi1>
    %71 = vector.broadcast %70 : vector<1x128xi1> to vector<8x128xi1>
    %72 = vector.broadcast %cst_24 : f32 to vector<8x128xf32>
    %73 = arith.select %71, %69, %72 : vector<8x128xi1>, vector<8x128xf32>
    %cst_25 = arith.constant 0.000000e+00 : f32
    %74 = vector.shape_cast %45 : vector<1x128xi1> to vector<1x128xi1>
    %75 = vector.broadcast %74 : vector<1x128xi1> to vector<8x128xi1>
    %76 = vector.broadcast %cst_25 : f32 to vector<8x128xf32>
    %77 = arith.select %75, %1, %76 : vector<8x128xi1>, vector<8x128xf32>
    %c127_i32 = arith.constant 127 : i32
    %78 = tpu.dynamic_rotate %1 by %c127_i32 dim 1 : vector<8x128xf32>, i32 -> vector<8x128xf32>
    %cst_26 = arith.constant 0.000000e+00 : f32
    %79 = vector.shape_cast %54 : vector<1x128xi1> to vector<1x128xi1>
    %80 = vector.broadcast %79 : vector<1x128xi1> to vector<8x128xi1>
    %81 = vector.broadcast %cst_26 : f32 to vector<8x128xf32>
    %82 = arith.select %80, %78, %81 : vector<8x128xi1>, vector<8x128xf32>
    %c126_i32 = arith.constant 126 : i32
    %83 = tpu.dynamic_rotate %1 by %c126_i32 dim 1 : vector<8x128xf32>, i32 -> vector<8x128xf32>
    %cst_27 = arith.constant 0.000000e+00 : f32
    %84 = vector.shape_cast %63 : vector<1x128xi1> to vector<1x128xi1>
    %85 = vector.broadcast %84 : vector<1x128xi1> to vector<8x128xi1>
    %86 = vector.broadcast %cst_27 : f32 to vector<8x128xf32>
    %87 = arith.select %85, %83, %86 : vector<8x128xi1>, vector<8x128xf32>
    %88 = tpu.concatenate %68, %73, %77, %82, %87 in 0 : vector<8x128xf32>, vector<8x128xf32>, vector<8x128xf32>, vector<8x128xf32>, vector<8x128xf32> -> vector<40x128xf32>
    %c0_28 = arith.constant 0 : index
    %c0_29 = arith.constant 0 : index
    %89 = vector.load %arg2[%c0_28, %c0_29] : memref<8x40xf32, #tpu.memory_space<vmem>>, vector<8x40xf32>
    %cst_30 = arith.constant dense<0.000000e+00> : vector<8x128xf32>
    %90 = tpu.matmul %89, %88, %cst_30 {dimension_numbers = #tpu.dot_dimension_numbers<[1], [0], [0], [1], [0, 0, 1, 1], [], []>} : vector<8x40xf32>, vector<40x128xf32>, vector<8x128xf32> -> vector<8x128xf32>
    %c0_31 = arith.constant 0 : index
    %c0_32 = arith.constant 0 : index
    %91 = vector.load %arg3[%c0_31, %c0_32] : memref<8x1xf32, #tpu.memory_space<vmem>>, vector<8x1xf32>
    %92 = vector.broadcast %91 : vector<8x1xf32> to vector<8x128xf32>
    %93 = arith.addf %90, %92 : vector<8x128xf32>
    %cst_33 = arith.constant 0.000000e+00 : f32
    %94 = vector.broadcast %cst_33 : f32 to vector<8x128xf32>
    %95 = arith.maximumf %93, %94 : vector<8x128xf32>
    %c2_i32_34 = arith.constant 2 : i32
    %96 = tpu.dynamic_rotate %95 by %c2_i32_34 dim 1 : vector<8x128xf32>, i32 -> vector<8x128xf32>
    %cst_35 = arith.constant 0.000000e+00 : f32
    %97 = vector.shape_cast %27 : vector<1x128xi1> to vector<1x128xi1>
    %98 = vector.broadcast %97 : vector<1x128xi1> to vector<8x128xi1>
    %99 = vector.broadcast %cst_35 : f32 to vector<8x128xf32>
    %100 = arith.select %98, %96, %99 : vector<8x128xi1>, vector<8x128xf32>
    %c1_i32_36 = arith.constant 1 : i32
    %101 = tpu.dynamic_rotate %95 by %c1_i32_36 dim 1 : vector<8x128xf32>, i32 -> vector<8x128xf32>
    %cst_37 = arith.constant 0.000000e+00 : f32
    %102 = vector.shape_cast %36 : vector<1x128xi1> to vector<1x128xi1>
    %103 = vector.broadcast %102 : vector<1x128xi1> to vector<8x128xi1>
    %104 = vector.broadcast %cst_37 : f32 to vector<8x128xf32>
    %105 = arith.select %103, %101, %104 : vector<8x128xi1>, vector<8x128xf32>
    %cst_38 = arith.constant 0.000000e+00 : f32
    %106 = vector.shape_cast %45 : vector<1x128xi1> to vector<1x128xi1>
    %107 = vector.broadcast %106 : vector<1x128xi1> to vector<8x128xi1>
    %108 = vector.broadcast %cst_38 : f32 to vector<8x128xf32>
    %109 = arith.select %107, %95, %108 : vector<8x128xi1>, vector<8x128xf32>
    %c127_i32_39 = arith.constant 127 : i32
    %110 = tpu.dynamic_rotate %95 by %c127_i32_39 dim 1 : vector<8x128xf32>, i32 -> vector<8x128xf32>
    %cst_40 = arith.constant 0.000000e+00 : f32
    %111 = vector.shape_cast %54 : vector<1x128xi1> to vector<1x128xi1>
    %112 = vector.broadcast %111 : vector<1x128xi1> to vector<8x128xi1>
    %113 = vector.broadcast %cst_40 : f32 to vector<8x128xf32>
    %114 = arith.select %112, %110, %113 : vector<8x128xi1>, vector<8x128xf32>
    %c126_i32_41 = arith.constant 126 : i32
    %115 = tpu.dynamic_rotate %95 by %c126_i32_41 dim 1 : vector<8x128xf32>, i32 -> vector<8x128xf32>
    %cst_42 = arith.constant 0.000000e+00 : f32
    %116 = vector.shape_cast %63 : vector<1x128xi1> to vector<1x128xi1>
    %117 = vector.broadcast %116 : vector<1x128xi1> to vector<8x128xi1>
    %118 = vector.broadcast %cst_42 : f32 to vector<8x128xf32>
    %119 = arith.select %117, %115, %118 : vector<8x128xi1>, vector<8x128xf32>
    %120 = tpu.concatenate %100, %105, %109, %114, %119 in 0 : vector<8x128xf32>, vector<8x128xf32>, vector<8x128xf32>, vector<8x128xf32>, vector<8x128xf32> -> vector<40x128xf32>
    %c0_43 = arith.constant 0 : index
    %c0_44 = arith.constant 0 : index
    %121 = vector.load %arg4[%c0_43, %c0_44] : memref<8x40xf32, #tpu.memory_space<vmem>>, vector<8x40xf32>
    %cst_45 = arith.constant dense<0.000000e+00> : vector<8x128xf32>
    %122 = tpu.matmul %121, %120, %cst_45 {dimension_numbers = #tpu.dot_dimension_numbers<[1], [0], [0], [1], [0, 0, 1, 1], [], []>} : vector<8x40xf32>, vector<40x128xf32>, vector<8x128xf32> -> vector<8x128xf32>
    %c0_46 = arith.constant 0 : index
    %c0_47 = arith.constant 0 : index
    %123 = vector.load %arg5[%c0_46, %c0_47] : memref<8x1xf32, #tpu.memory_space<vmem>>, vector<8x1xf32>
    %124 = vector.broadcast %123 : vector<8x1xf32> to vector<8x128xf32>
    %125 = arith.addf %122, %124 : vector<8x128xf32>
    %cst_48 = arith.constant 0.000000e+00 : f32
    %126 = vector.broadcast %cst_48 : f32 to vector<8x128xf32>
    %127 = arith.maximumf %125, %126 : vector<8x128xf32>
    %128 = arith.addf %1, %127 : vector<8x128xf32>
    %c0_49 = arith.constant 0 : index
    %c0_50 = arith.constant 0 : index
    %c0_51 = arith.constant 0 : index
    %129 = vector.load %arg6[%c0_49, %c0_50, %c0_51] : memref<1x8x128xf32, #tpu.memory_space<vmem>>, vector<1x8x128xf32>
    %130 = vector.shape_cast %129 : vector<1x8x128xf32> to vector<8x128xf32>
    %131 = vector.shape_cast %128 : vector<8x128xf32> to vector<1x8x128xf32>
    tpu.vector_store %arg6[%c0_49, %c0_50, %c0_51], %131 {strides = array<i32>} : memref<1x8x128xf32, #tpu.memory_space<vmem>>, vector<1x8x128xf32>,
    return
  }
  func.func @transform_0(%arg0: i32) -> (i32, i32, i32) {
    %c0_i32 = arith.constant 0 : i32
    %c0_i32_0 = arith.constant 0 : i32
    %c0_i32_1 = arith.constant 0 : i32
    return %arg0, %c0_i32, %c0_i32_0 : i32, i32, i32
  }
  func.func @transform_1(%arg0: i32) -> (i32, i32) {
    %c0_i32 = arith.constant 0 : i32
    %c0_i32_0 = arith.constant 0 : i32
    %c0_i32_1 = arith.constant 0 : i32
    return %c0_i32, %c0_i32_0 : i32, i32
  }
  func.func @transform_2(%arg0: i32) -> (i32, i32) {
    %c0_i32 = arith.constant 0 : i32
    %c0_i32_0 = arith.constant 0 : i32
    %c0_i32_1 = arith.constant 0 : i32
    return %c0_i32, %c0_i32_0 : i32, i32
  }
  func.func @transform_3(%arg0: i32) -> (i32, i32) {
    %c0_i32 = arith.constant 0 : i32
    %c0_i32_0 = arith.constant 0 : i32
    %c0_i32_1 = arith.constant 0 : i32
    return %c0_i32, %c0_i32_0 : i32, i32
  }
  func.func @transform_4(%arg0: i32) -> (i32, i32) {
    %c0_i32 = arith.constant 0 : i32
    %c0_i32_0 = arith.constant 0 : i32
    %c0_i32_1 = arith.constant 0 : i32
    return %c0_i32, %c0_i32_0 : i32, i32
  }
  func.func @transform_5(%arg0: i32) -> (i32, i32, i32) {
    %c0_i32 = arith.constant 0 : i32
    %c0_i32_0 = arith.constant 0 : i32
    %c0_i32_1 = arith.constant 0 : i32
    return %arg0, %c0_i32, %c0_i32_0 : i32, i32, i32
  }
}

</mosaic_0001>

<llo_original>
// kernel: tpu_custom_call.1
$region0: #{tpu_custom_call.1}
  #allocation0 [shape = 'u32[]', space=smem, size = 0x4, offset = 0x4, fixed_abs, tag = 'smem constant byte address 0x4 - core index']
  #allocation1 [shape = 'u32[144,128]{1,0:T(1,128)}', space=vmem, size = 0x12000, scoped, tag = 'internal scratch']
  %s0 = inlined_call_operand.vmem [shape: f32[2,8,128], index: 0, kind: input, shape index: {}]
  %s1 = inlined_call_operand.hbm [shape: f32[8,40], index: 1, kind: input, shape index: {}]
  %s2 = inlined_call_operand.vmem [shape: f32[8,1], index: 2, kind: input, shape index: {}]
  %s3 = inlined_call_operand.vmem [shape: f32[8,40], index: 3, kind: input, shape index: {}]
  %s4 = inlined_call_operand.vmem [shape: f32[8,1], index: 4, kind: input, shape index: {}]
  %s5 = inlined_call_operand.hbm [shape: f32[2,8,128], index: 5, kind: output, shape index: {}]
  %s6 = sld [smem:[#allocation0]]
  $region57: #{tpu_custom_call.1} parent=0
    _
  %s8 = ssub.s32 1, %s6
  %s9 = scalar_select 0, %s8, %s6
  $region1: #{tpu_custom_call.1} parent=0
    #allocation2 [shape = 'u8[4096]{0}', space=vmem, size = 0x1000, scoped, tag = 'input window, operand 1, single buffered']
    #allocation3 [shape = 's32[2]{0}', space=sflag, size = 0x8, scoped, tag = 'scoped memory for tpu_custom_call.1']
    #allocation4 [shape = 's32[2]{0}', space=sflag, size = 0x8, scoped, tag = 'scoped memory for tpu_custom_call.1']
    #allocation5 [shape = 'u8[8192]{0}', space=vmem, size = 0x2000, scoped, tag = 'output window, operand 0']
    %10 = vsyncpa [#allocation3], 0
    %11 = vsyncpa [#allocation4], 0
    %s12 = scalar_lea.sflag [#allocation4], 1
    %13 = vsyncpa %s12, 0
    loop: start=0, step=1, limit=4
    $region2: #{tpu_custom_call.1} parent=1 // loop_pre_header
      _
    $region3: #{tpu_custom_call.1} parent=1 // loop_header
      %s15 = sphi 0, %s19
      %p16 = scmp.ge.s32.totalorder %s15, 4
      %s25 = sphi 0, %s27
      %s28 = sphi 0, %s25
      %s29 = sphi 0, %s28
      %s45 = sphi 0, %s29
      %s49 = sphi 0, %s49
      %s51 = sphi 0, %s49
      %s52 = sphi 0, %s51
      %s66 = sphi 0, %s52
      %s70 = sphi 0, %s70
      %s72 = sphi 0, %s70
      %s73 = sphi 0, %s72
      %s87 = sphi 0, %s73
      %s91 = sphi 0, %s91
      %s93 = sphi 0, %s91
      %s94 = sphi 0, %s93
      %s108 = sphi 0, %s94
      %s112 = sphi 0, %s112
      %s114 = sphi 0, %s112
      %s115 = sphi 0, %s114
      %s129 = sphi 0, %s115
      %s135 = sphi 0, %s137
      %s138 = sphi 0, %s135
      %s139 = sphi 0, %s138
      %s155 = sphi 0, %s139
    $region4: #{tpu_custom_call.1} parent=1 // loop_header_branch
      %18 = sbr.rel (%p16) target = $region8
    $region5: #{tpu_custom_call.1} parent=1 // loop_body
      %s20 = ssub.s32 %s15, 1
      %s21 = ssub.s32 %s15, 2
      %s22 = sadd.s32 %s15, 1
      %s23 = ssub.s32 %s15, %s22
      %p24 = scmp.eq.s32.totalorder %s23, 0
      %s26 = sadd.s32 %s25, 1
      %s27 = scalar_select %p24, %s25, %s26
      %p30 = pneg %p24
      %p31 = scmp.eq.s32.totalorder %s15, 1
      %p32 = por %p30, %p31
      %p33 = scmp.ne.s32.totalorder %s25, %s28
      %p34 = scmp.eq.s32.totalorder %s15, 0
      %p35 = por %p33, %p34
      %p36 = scmp.ne.s32.totalorder %s25, %s28
      %p37 = scmp.eq.s32.totalorder %s20, 1
      %p38 = por %p36, %p37
      %p39 = scmp.ne.s32.totalorder %s28, %s29
      %p40 = scmp.eq.s32.totalorder %s20, 0
      %p41 = por %p39, %p40
      %p42 = scmp.ne.s32.totalorder %s28, %s29
      %p43 = scmp.eq.s32.totalorder %s21, 1
      %p44 = por %p42, %p43
      %p46 = scmp.ne.s32.totalorder %s29, %s45
      %p47 = scmp.eq.s32.totalorder %s21, 0
      %p48 = por %p46, %p47
      %s50 = sadd.s32 %s49, 1
      %p53 = scmp.eq.s32.totalorder %s15, 1
      %p54 = scmp.ne.s32.totalorder %s49, %s51
      %p55 = scmp.eq.s32.totalorder %s15, 0
      %p56 = por %p54, %p55
      %p57 = scmp.ne.s32.totalorder %s49, %s51
      %p58 = scmp.eq.s32.totalorder %s20, 1
      %p59 = por %p57, %p58
      %p60 = scmp.ne.s32.totalorder %s51, %s52
      %p61 = scmp.eq.s32.totalorder %s20, 0
      %p62 = por %p60, %p61
      %p63 = scmp.ne.s32.totalorder %s51, %s52
      %p64 = scmp.eq.s32.totalorder %s21, 1
      %p65 = por %p63, %p64
      %p67 = scmp.ne.s32.totalorder %s52, %s66
      %p68 = scmp.eq.s32.totalorder %s21, 0
      %p69 = por %p67, %p68
      %s71 = sadd.s32 %s70, 1
      %p74 = scmp.eq.s32.totalorder %s15, 1
      %p75 = scmp.ne.s32.totalorder %s70, %s72
      %p76 = scmp.eq.s32.totalorder %s15, 0
      %p77 = por %p75, %p76
      %p78 = scmp.ne.s32.totalorder %s70, %s72
      %p79 = scmp.eq.s32.totalorder %s20, 1
      %p80 = por %p78, %p79
      %p81 = scmp.ne.s32.totalorder %s72, %s73
      %p82 = scmp.eq.s32.totalorder %s20, 0
      %p83 = por %p81, %p82
      %p84 = scmp.ne.s32.totalorder %s72, %s73
      %p85 = scmp.eq.s32.totalorder %s21, 1
      %p86 = por %p84, %p85
      %p88 = scmp.ne.s32.totalorder %s73, %s87
      %p89 = scmp.eq.s32.totalorder %s21, 0
      %p90 = por %p88, %p89
      %s92 = sadd.s32 %s91, 1
      %p95 = scmp.eq.s32.totalorder %s15, 1
      %p96 = scmp.ne.s32.totalorder %s91, %s93
      %p97 = scmp.eq.s32.totalorder %s15, 0
      %p98 = por %p96, %p97
      %p99 = scmp.ne.s32.totalorder %s91, %s93
      %p100 = scmp.eq.s32.totalorder %s20, 1
      %p101 = por %p99, %p100
      %p102 = scmp.ne.s32.totalorder %s93, %s94
      %p103 = scmp.eq.s32.totalorder %s20, 0
      %p104 = por %p102, %p103
      %p105 = scmp.ne.s32.totalorder %s93, %s94
      %p106 = scmp.eq.s32.totalorder %s21, 1
      %p107 = por %p105, %p106
      %p109 = scmp.ne.s32.totalorder %s94, %s108
      %p110 = scmp.eq.s32.totalorder %s21, 0
      %p111 = por %p109, %p110
      %s113 = sadd.s32 %s112, 1
      %p116 = scmp.eq.s32.totalorder %s15, 1
      %p117 = scmp.ne.s32.totalorder %s112, %s114
      %p118 = scmp.eq.s32.totalorder %s15, 0
      %p119 = por %p117, %p118
      %p120 = scmp.ne.s32.totalorder %s112, %s114
      %p121 = scmp.eq.s32.totalorder %s20, 1
      %p122 = por %p120, %p121
      %p123 = scmp.ne.s32.totalorder %s114, %s115
      %p124 = scmp.eq.s32.totalorder %s20, 0
      %p125 = por %p123, %p124
      %p126 = scmp.ne.s32.totalorder %s114, %s115
      %p127 = scmp.eq.s32.totalorder %s21, 1
      %p128 = por %p126, %p127
      %p130 = scmp.ne.s32.totalorder %s115, %s129
      %p131 = scmp.eq.s32.totalorder %s21, 0
      %p132 = por %p130, %p131
      %s133 = ssub.s32 %s15, %s22
      %p134 = scmp.eq.s32.totalorder %s133, 0
      %s136 = sadd.s32 %s135, 1
      %s137 = scalar_select %p134, %s135, %s136
      %p140 = pneg %p134
      %p141 = scmp.eq.s32.totalorder %s15, 1
      %p142 = por %p140, %p141
      %p143 = scmp.ne.s32.totalorder %s135, %s138
      %p144 = scmp.eq.s32.totalorder %s15, 0
      %p145 = por %p143, %p144
      %p146 = scmp.ne.s32.totalorder %s135, %s138
      %p147 = scmp.eq.s32.totalorder %s20, 1
      %p148 = por %p146, %p147
      %p149 = scmp.ne.s32.totalorder %s138, %s139
      %p150 = scmp.eq.s32.totalorder %s20, 0
      %p151 = por %p149, %p150
      %p152 = scmp.ne.s32.totalorder %s138, %s139
      %p153 = scmp.eq.s32.totalorder %s21, 1
      %p154 = por %p152, %p153
      %p156 = scmp.ne.s32.totalorder %s139, %s155
      %p157 = scmp.eq.s32.totalorder %s21, 0
      %p158 = por %p156, %p157
      %p159 = scmp.le.s32.totalorder 1, %s15
      %p160 = scmp.lt.s32.totalorder %s15, 3
      %p161 = pnand %p159, %p160
      %p162 = pneg %p161
      // Predicated region
      $region9: #{tpu_custom_call.1} parent=5 // pred_check
        _
      $region10: #{tpu_custom_call.1} parent=5 // pred_check_branch
        %164 = sbr.rel (%p161) target = $region12
      $region11: #{tpu_custom_call.1} parent=5 // pred_region
        %s165 = ssub.s32 %s15, 1
        // Predicated region
        $region13: #{tpu_custom_call.1} parent=11 // pred_check
          %p166 = pneg %p62
        $region14: #{tpu_custom_call.1} parent=11 // pred_check_branch
          %168 = sbr.rel (%p166) target = $region16
        $region15: #{tpu_custom_call.1} parent=11 // pred_region
          %s170 = ssub.s32 128, 128
          %171 = vsyncadd [#allocation3], %s170
          %s173 = sshll.u32 [#allocation2], 4
          %s174 = int_to_ptr.vmem [resolvable:$true] %s173
          %176 = dma.hbm_to_vmem [thread:$0]  %s1, 128, %s174, [#allocation3]
        $region16: #{tpu_custom_call.1} parent=11 // pred_fallthru
          _
        // Predicated region
        $region17: #{tpu_custom_call.1} parent=11 // pred_check
          %p177 = pneg %p83
        $region18: #{tpu_custom_call.1} parent=11 // pred_check_branch
          %179 = sbr.rel (%p177) target = $region20
        $region19: #{tpu_custom_call.1} parent=11 // pred_region
          _
        $region20: #{tpu_custom_call.1} parent=11 // pred_fallthru
          _
        // Predicated region
        $region21: #{tpu_custom_call.1} parent=11 // pred_check
          %p180 = pneg %p104
        $region22: #{tpu_custom_call.1} parent=11 // pred_check_branch
          %182 = sbr.rel (%p180) target = $region24
        $region23: #{tpu_custom_call.1} parent=11 // pred_region
          _
        $region24: #{tpu_custom_call.1} parent=11 // pred_fallthru
          _
        // Predicated region
        $region25: #{tpu_custom_call.1} parent=11 // pred_check
          %p183 = pneg %p125
        $region26: #{tpu_custom_call.1} parent=11 // pred_check_branch
          %185 = sbr.rel (%p183) target = $region28
        $region27: #{tpu_custom_call.1} parent=11 // pred_region
          _
        $region28: #{tpu_custom_call.1} parent=11 // pred_fallthru
          _
      $region12: #{tpu_custom_call.1} parent=5 // pred_fallthru
        _
      %p186 = scmp.lt.s32.totalorder %s15, 2
      // Predicated region
      $region29: #{tpu_custom_call.1} parent=5 // pred_check
        %p187 = pneg %p186
      $region30: #{tpu_custom_call.1} parent=5 // pred_check_branch
        %189 = sbr.rel (%p187) target = $region32
      $region31: #{tpu_custom_call.1} parent=5 // pred_region
        // Predicated region
        $region33: #{tpu_custom_call.1} parent=31 // pred_check
          %p190 = pneg %p35
        $region34: #{tpu_custom_call.1} parent=31 // pred_check_branch
          %192 = sbr.rel (%p190) target = $region36
        $region35: #{tpu_custom_call.1} parent=31 // pred_region
          %p193 = scmp.lt.s32.totalorder %s15, 1
          %s194 = scalar_select %p193, %s15, 1
          %s195 = smul.addr %s194, 8
          %s196 = scalar_lea.vmem %s0, %s195
        $region36: #{tpu_custom_call.1} parent=31 // pred_fallthru
          _
      $region32: #{tpu_custom_call.1} parent=5 // pred_fallthru
        _
      %p197 = scmp.le.s32.totalorder 1, %s15
      %p198 = scmp.lt.s32.totalorder %s15, 3
      %p199 = pnand %p197, %p198
      %p200 = pneg %p199
      // Predicated region
      $region37: #{tpu_custom_call.1} parent=5 // pred_check
        _
      $region38: #{tpu_custom_call.1} parent=5 // pred_check_branch
        %202 = sbr.rel (%p199) target = $region40
      $region39: #{tpu_custom_call.1} parent=5 // pred_region
        %s203 = ssub.s32 %s15, 1
        // Predicated region
        $region41: #{tpu_custom_call.1} parent=39 // pred_check
          %p204 = pneg %p62
        $region42: #{tpu_custom_call.1} parent=39 // pred_check_branch
          %206 = sbr.rel (%p204) target = $region44
        $region43: #{tpu_custom_call.1} parent=39 // pred_region
          %207 = dma.done [#allocation3], 128
        $region44: #{tpu_custom_call.1} parent=39 // pred_fallthru
          _
        %p208 = scmp.lt.s32.totalorder %s20, 1
        %s209 = scalar_select %p208, %s20, 1
        %s210 = smul.addr %s209, 8
        %s211 = scalar_lea.vmem %s0, %s210
        %p212 = pneg %p41
        %p213 = pneg %p38
        %p214 = pneg %p62
        %p215 = pneg %p59
        %p216 = pneg %p83
        %p217 = pneg %p80
        %p218 = pneg %p104
        %p219 = pneg %p101
        %p220 = pneg %p125
        %p221 = pneg %p122
        %p222 = pneg %p151
        %p223 = pneg %p148
        %s224 = sand.u32 %s138, 1
        %s225 = scalar_lea.sflag [#allocation4], %s224
        %s226 = sand.u32 %s138, 1
        %s227 = smul.addr %s226, 8
        %s228 = scalar_lea.vmem [#allocation5], %s227
        %p229 = scmp.lt.s32.totalorder %s20, 1
        %s230 = scalar_select %p229, %s20, 1
        %s231 = smul.addr %s230, 8
        %s232 = scalar_lea.vmem %s0, %s231
        %v233 = vld [vmem:[%s232] sm:$0xff]
        %v234 = vlaneseq
        %v235 = vand.u32 %v234, 127
        %vm236 = vcmp.lt.s32.totalorder %v235, 0
        %v237 = vsub.s32 0, %v235
        %v238 = vsel %vm236, %v237, %v235
        %v239 = vshrl.u32 %v238, 4
        %v240 = vand.u32 %v238, 15
        %v241 = vsub.s32 0, %v240
        %v242 = vsel %vm236, %v241, %v240
        %vm243 = vcmp.ne.s32.totalorder %v242, 0
        %vm244 = vcmp.lt.s32.totalorder %v242, 0
        %vm245 = vmand %vm244, %vm243
        %v246 = vadd.s32 %v242, 16
        %v247 = vsel %vm245, %v246, %v242
        %v248 = vadd.s32 %v247, 4294967294
        %vm249 = vcmp.ge.s32.totalorder %v248, 0
        %vm250 = vcmp.lt.s32.totalorder %v248, 16
        %vm251 = vmand %vm249, %vm250
        %v252 = vadd.s32 %v247, 4294967295
        %vm253 = vcmp.ge.s32.totalorder %v252, 0
        %vm254 = vcmp.lt.s32.totalorder %v252, 16
        %vm255 = vmand %vm253, %vm254
        %vm256 = vcmp.ge.s32.totalorder %v247, 0
        %vm257 = vcmp.lt.s32.totalorder %v247, 16
        %vm258 = vmand %vm256, %vm257
        %v259 = vadd.s32 %v247, 1
        %vm260 = vcmp.ge.s32.totalorder %v259, 0
        %vm261 = vcmp.lt.s32.totalorder %v259, 16
        %vm262 = vmand %vm260, %vm261
        %v263 = vadd.s32 %v247, 2
        %vm264 = vcmp.ge.s32.totalorder %v263, 0
        %vm265 = vcmp.lt.s32.totalorder %v263, 16
        %vm266 = vmand %vm264, %vm265
        %267 = vrot.lane.b32.xlu0 %v233, 2
        %v268 = vpop.permute.xlu0 %267
        %v269 = vsel %vm251, 1, 0
        %vm270 = vcmp.eq.s32.totalorder %v269, 1
        %v271 = vsel %vm270, %v268, 0.0
        %272 = vrot.lane.b32.xlu0 %v233, 1
        %v273 = vpop.permute.xlu0 %272
        %v274 = vsel %vm255, 1, 0
        %vm275 = vcmp.eq.s32.totalorder %v274, 1
        %v276 = vsel %vm275, %v273, 0.0
        %v277 = vsel %vm258, 1, 0
        %vm278 = vcmp.eq.s32.totalorder %v277, 1
        %v279 = vsel %vm278, %v233, 0.0
        %280 = vrot.lane.b32.xlu0 %v233, 127
        %v281 = vpop.permute.xlu0 %280
        %v282 = vsel %vm262, 1, 0
        %vm283 = vcmp.eq.s32.totalorder %v282, 1
        %v284 = vsel %vm283, %v281, 0.0
        %285 = vrot.lane.b32.xlu0 %v233, 126
        %v286 = vpop.permute.xlu0 %285
        %v287 = vsel %vm266, 1, 0
        %vm288 = vcmp.eq.s32.totalorder %v287, 1
        %v289 = vsel %vm288, %v286, 0.0
        %v290 = vld [vmem:[#allocation2] sm:$0xff]
        %v291 = vld [vmem:[%s2] sm:$0xff]
        %293 = vset.pattern.permute.xlu0 0
        %294 = vperm.xlu0 %293, %v291
        %v295 = vpop.permute.xlu0 %294
        %vm297 = vcmask 326656
        %v299 = vsel %vm297, %v290, 0
        %301 = vmatprep.subr.mxu0 0.0
        %302 = vmatpush1.msra.mxu0 %v271
        %303 = vmatprep.subr.mxu0 0.0
        %304 = vmatpush1.msra.mxu0 %v276
        %305 = vmatprep.subr.mxu0 0.0
        %306 = vmatpush1.msra.mxu0 %v279
        %307 = vmatprep.subr.mxu0 0.0
        %308 = vmatpush1.msra.mxu0 %v284
        %309 = vmatprep.subr.mxu0 0.0
        %310 = vmatpush1.msra.mxu0 %v289
        %311 = vmatprep.subr.mxu0 0.0
        %312 = vmatpush1.msra.mxu0 0.0
        %313 = vmatprep.subr.mxu0 0.0
        %314 = vmatpush1.msra.mxu0 0.0
        %315 = vmatprep.subr.mxu0 0.0
        %316 = vmatpush1.msra.mxu0 0.0
        %317 = vmatprep.subr.mxu0 0.0
        %318 = vmatpush1.msra.mxu0 0.0
        %319 = vmatprep.subr.mxu0 0.0
        %320 = vmatpush1.msra.mxu0 0.0
        %321 = vmatprep.subr.mxu0 0.0
        %322 = vmatpush1.msra.mxu0 0.0
        %323 = vmatprep.subr.mxu0 0.0
        %324 = vmatpush1.msra.mxu0 0.0
        %325 = vmatprep.subr.mxu0 0.0
        %326 = vmatpush1.msra.mxu0 0.0
        %327 = vmatprep.subr.mxu0 0.0
        %328 = vmatpush1.msra.mxu0 0.0
        %329 = vmatprep.subr.mxu0 0.0
        %330 = vmatpush1.msra.mxu0 0.0
        %331 = vmatprep.subr.mxu0 0.0
        %332 = vmatpush1.msra.mxu0 0.0
        %333 = vmatprep.subr.mxu0 0.0
        %334 = vmatpush1.msra.mxu0 0.0
        %335 = vmatprep.subr.mxu0 0.0
        %336 = vmatpush1.msra.mxu0 0.0
        %337 = vmatprep.subr.mxu0 0.0
        %338 = vmatpush1.msra.mxu0 0.0
        %339 = vmatprep.subr.mxu0 0.0
        %340 = vmatpush1.msra.mxu0 0.0
        %341 = vmatprep.subr.mxu0 0.0
        %342 = vmatpush1.msra.mxu0 0.0
        %343 = vmatprep.subr.mxu0 0.0
        %344 = vmatpush1.msra.mxu0 0.0
        %345 = vmatprep.subr.mxu0 0.0
        %346 = vmatpush1.msra.mxu0 0.0
        %347 = vmatprep.subr.mxu0 0.0
        %348 = vmatpush1.msra.mxu0 0.0
        %349 = vmatprep.subr.mxu0 0.0
        %350 = vmatpush1.msra.mxu0 0.0
        %351 = vmatprep.subr.mxu0 0.0
        %352 = vmatpush1.msra.mxu0 0.0
        %353 = vmatprep.subr.mxu0 0.0
        %354 = vmatpush1.msra.mxu0 0.0
        %355 = vmatprep.subr.mxu0 0.0
        %356 = vmatpush1.msra.mxu0 0.0
        %357 = vmatprep.subr.mxu0 0.0
        %358 = vmatpush1.msra.mxu0 0.0
        %359 = vmatprep.subr.mxu0 0.0
        %360 = vmatpush1.msra.mxu0 0.0
        %361 = vmatprep.subr.mxu0 0.0
        %362 = vmatpush1.msra.mxu0 0.0
        %363 = vmatprep.subr.mxu0 0.0
        %364 = vmatpush1.msra.mxu0 0.0
        %365 = vmatprep.mubr.f32.mxu0 0.0
        %366 = vmatmul.mubr.f32.gmra.mrb[0].mxu0 %v299
        %v367 = vpop.f32.mrb[0].mxu0
        %v368 = vadd.f32 %v295, %v367
        %v369 = vpop.f32.mrb[0].mxu0
        %370 = vdwg.mxu0
        %v371 = vmax.f32 %v368, 0.0
        %372 = vrot.lane.b32.xlu0 %v371, 2
        %v373 = vpop.permute.xlu0 %372
        %v374 = vsel %vm270, %v373, 0.0
        %375 = vrot.lane.b32.xlu0 %v371, 1
        %v376 = vpop.permute.xlu0 %375
        %v377 = vsel %vm275, %v376, 0.0
        %v378 = vsel %vm278, %v371, 0.0
        %379 = vrot.lane.b32.xlu0 %v371, 127
        %v380 = vpop.permute.xlu0 %379
        %v381 = vsel %vm283, %v380, 0.0
        %382 = vrot.lane.b32.xlu0 %v371, 126
        %v383 = vpop.permute.xlu0 %382
        %v384 = vsel %vm288, %v383, 0.0
        %v385 = vld [vmem:[%s3] sm:$0xff]
        %v386 = vld [vmem:[%s4] sm:$0xff]
        %388 = vset.pattern.permute.xlu0 0
        %389 = vperm.xlu0 %388, %v386
        %v390 = vpop.permute.xlu0 %389
        %v393 = vsel %vm297, %v385, 0
        %395 = vmatprep.subr.mxu0 0.0
        %396 = vmatpush1.msra.mxu0 %v374
        %397 = vmatprep.subr.mxu0 0.0
        %398 = vmatpush1.msra.mxu0 %v377
        %399 = vmatprep.subr.mxu0 0.0
        %400 = vmatpush1.msra.mxu0 %v378
        %401 = vmatprep.subr.mxu0 0.0
        %402 = vmatpush1.msra.mxu0 %v381
        %403 = vmatprep.subr.mxu0 0.0
        %404 = vmatpush1.msra.mxu0 %v384
        %405 = vmatprep.subr.mxu0 0.0
        %406 = vmatpush1.msra.mxu0 0.0
        %407 = vmatprep.subr.mxu0 0.0
        %408 = vmatpush1.msra.mxu0 0.0
        %409 = vmatprep.subr.mxu0 0.0
        %410 = vmatpush1.msra.mxu0 0.0
        %411 = vmatprep.subr.mxu0 0.0
        %412 = vmatpush1.msra.mxu0 0.0
        %413 = vmatprep.subr.mxu0 0.0
        %414 = vmatpush1.msra.mxu0 0.0
        %415 = vmatprep.subr.mxu0 0.0
        %416 = vmatpush1.msra.mxu0 0.0
        %417 = vmatprep.subr.mxu0 0.0
        %418 = vmatpush1.msra.mxu0 0.0
        %419 = vmatprep.subr.mxu0 0.0
        %420 = vmatpush1.msra.mxu0 0.0
        %421 = vmatprep.subr.mxu0 0.0
        %422 = vmatpush1.msra.mxu0 0.0
        %423 = vmatprep.subr.mxu0 0.0
        %424 = vmatpush1.msra.mxu0 0.0
        %425 = vmatprep.subr.mxu0 0.0
        %426 = vmatpush1.msra.mxu0 0.0
        %427 = vmatprep.subr.mxu0 0.0
        %428 = vmatpush1.msra.mxu0 0.0
        %429 = vmatprep.subr.mxu0 0.0
        %430 = vmatpush1.msra.mxu0 0.0
        %431 = vmatprep.subr.mxu0 0.0
        %432 = vmatpush1.msra.mxu0 0.0
        %433 = vmatprep.subr.mxu0 0.0
        %434 = vmatpush1.msra.mxu0 0.0
        %435 = vmatprep.subr.mxu0 0.0
        %436 = vmatpush1.msra.mxu0 0.0
        %437 = vmatprep.subr.mxu0 0.0
        %438 = vmatpush1.msra.mxu0 0.0
        %439 = vmatprep.subr.mxu0 0.0
        %440 = vmatpush1.msra.mxu0 0.0
        %441 = vmatprep.subr.mxu0 0.0
        %442 = vmatpush1.msra.mxu0 0.0
        %443 = vmatprep.subr.mxu0 0.0
        %444 = vmatpush1.msra.mxu0 0.0
        %445 = vmatprep.subr.mxu0 0.0
        %446 = vmatpush1.msra.mxu0 0.0
        %447 = vmatprep.subr.mxu0 0.0
        %448 = vmatpush1.msra.mxu0 0.0
        %449 = vmatprep.subr.mxu0 0.0
        %450 = vmatpush1.msra.mxu0 0.0
        %451 = vmatprep.subr.mxu0 0.0
        %452 = vmatpush1.msra.mxu0 0.0
        %453 = vmatprep.subr.mxu0 0.0
        %454 = vmatpush1.msra.mxu0 0.0
        %455 = vmatprep.subr.mxu0 0.0
        %456 = vmatpush1.msra.mxu0 0.0
        %457 = vmatprep.subr.mxu0 0.0
        %458 = vmatpush1.msra.mxu0 0.0
        %459 = vmatprep.mubr.f32.mxu0 0.0
        %460 = vmatmul.mubr.f32.gmra.mrb[0].mxu0 %v393
        %v461 = vpop.f32.mrb[0].mxu0
        %v462 = vadd.f32 %v390, %v461
        %v463 = vpop.f32.mrb[0].mxu0
        %464 = vdwg.mxu0
        %v465 = vmax.f32 %v462, 0.0
        %v466 = vadd.f32 %v233, %v465
        %467 = vst [vmem:[%s228] sm:$0xff] %v466
        %s468 = sand.u32 %s138, 1
        %s469 = scalar_lea.sflag [#allocation4], %s468
        %s470 = sand.u32 %s138, 1
        %s471 = smul.addr %s470, 8
        %s472 = scalar_lea.vmem [#allocation5], %s471
        // Predicated region
        $region45: #{tpu_custom_call.1} parent=39 // pred_check
          %p473 = pneg %p148
        $region46: #{tpu_custom_call.1} parent=39 // pred_check_branch
          %475 = sbr.rel (%p473) target = $region48
        $region47: #{tpu_custom_call.1} parent=39 // pred_region
          %s477 = ssub.s32 128, 128
          %478 = vsyncadd %s469, %s477
          %s479 = smul.addr %s20, 128
          %s480 = scalar_lea.hbm %s5, %s479
          %s482 = sshll.u32 %s472, 4
          %s483 = int_to_ptr.vmem [resolvable:$true] %s482
          %485 = dma.vmem_to_hbm [thread:$0]  %s483, 128, %s480, %s469
        $region48: #{tpu_custom_call.1} parent=39 // pred_fallthru
          _
      $region40: #{tpu_custom_call.1} parent=5 // pred_fallthru
        _
      %p486 = scmp.le.s32.totalorder 2, %s15
      // Predicated region
      $region49: #{tpu_custom_call.1} parent=5 // pred_check
        %p487 = pneg %p486
      $region50: #{tpu_custom_call.1} parent=5 // pred_check_branch
        %489 = sbr.rel (%p487) target = $region52
      $region51: #{tpu_custom_call.1} parent=5 // pred_region
        %s490 = ssub.s32 %s15, 2
        // Predicated region
        $region53: #{tpu_custom_call.1} parent=51 // pred_check
          %p491 = pneg %p154
        $region54: #{tpu_custom_call.1} parent=51 // pred_check_branch
          %493 = sbr.rel (%p491) target = $region56
        $region55: #{tpu_custom_call.1} parent=51 // pred_region
          %s494 = sand.u32 %s139, 1
          %s495 = scalar_lea.sflag [#allocation4], %s494
          %s496 = sand.u32 %s139, 1
          %s497 = smul.addr %s496, 8
          %s498 = scalar_lea.vmem [#allocation5], %s497
          %499 = dma.done %s495, 128
        $region56: #{tpu_custom_call.1} parent=51 // pred_fallthru
          _
      $region52: #{tpu_custom_call.1} parent=5 // pred_fallthru
        _
    $region6: #{tpu_custom_call.1} parent=1 // loop_footer
      %s19 = sadd.s32 1, %s15
    $region7: #{tpu_custom_call.1} parent=1 // loop_footer_branch
      %14 = sbr.rel target = $region3
    $region8: #{tpu_custom_call.1} parent=1 // loop_exit
      _
    %500 = vsyncpa [#allocation3], 1
    %s501 = scalar_lea.sflag [#allocation3], 1
    %502 = vsyncpa %s501, 1
    %503 = vsyncpa [#allocation4], 1
    %s504 = scalar_lea.sflag [#allocation4], 1
    %505 = vsyncpa %s504, 1

</llo_original>
